<compile_context>
chip_gen: v7x
topology: tpu7x:2x2x1
jax: 0.10.0
libtpu: 0.0.40
codegen_flags: <defaults>
</compile_context>

<pallas_src>
import math

import jax
import jax.numpy as jnp
from jax import lax
from jax.experimental import pallas as pl
from jax.experimental.pallas import tpu as pltpu


_TIME_BUDGET_BYTES = 8 * 1024 * 1024     # double-buffered streaming blocks budget
_WEIGHT_BUDGET_BYTES = 16 * 1024 * 1024  # resident-weight budget before F-tiling


def _round_up(x, m):
    return ((x + m - 1) // m) * m


def _vmem_block_bytes(shape, itemsize):
    """Approximate VMEM bytes of one block after (8, 128) tile padding."""
    dims = list(shape)
    if len(dims) >= 1:
        dims[-1] = _round_up(dims[-1], 128)
    if len(dims) >= 2:
        dims[-2] = _round_up(dims[-2], 8)
    n = 1
    for d in dims:
        n *= d
    return n * itemsize


def _fusion_kernel(a_ref, v_ref, wa_ref, wv_ref, b_ref, o_ref):
    # a_ref : (1, A, tT)   audio block, native channel-major
    # v_ref : (1, tT, V)   visual block, time-major
    # wa_ref: (tF, A)      audio slice of fusion_proj.weight (PyTorch (out,in) layout)
    # wv_ref: (tF, V)      visual slice of fusion_proj.weight
    # b_ref : (tF, 1)      bias slice (broadcast over time)
    # o_ref : (1, tF, tT)  output block, channel-major
    a = a_ref[0]                                   # (A, tT)
    v = v_ref[0]                                   # (tT, V)

    # (tF, A) @ (A, tT) -> (tF, tT)
    acc = jnp.dot(wa_ref[...], a, preferred_element_type=jnp.float32)
    # Contract V (last/lane dim of BOTH operands): (tF, V) x (tT, V) -> (tF, tT).
    # Mosaic lowers this as a transposed-operand MXU matmul; no per-step (tT, V)
    # transpose is materialized (verify with pl.lower_as_mlir if the layer shapes
    # change drastically).
    acc += lax.dot_general(
        wv_ref[...], v,
        dimension_numbers=(((1,), (1,)), ((), ())),
        preferred_element_type=jnp.float32,
    )
    acc += b_ref[...].astype(jnp.float32)          # (tF, 1) broadcasts over tT
    o_ref[0] = acc.astype(o_ref.dtype)


def _pick_time_tile(T, A, V, F, itemsize):
    if T <= 128:
        return T                                   # full-dim block, always legal
    per_col = 2 * (A + V + F) * itemsize           # double-buffered bytes per time column
    tT = _TIME_BUDGET_BYTES // max(per_col, 1)
    tT = max(128, min(tT, 4096, T))
    return (tT // 128) * 128                       # keep lane-dense multiple of 128


def _pick_f_tile(F, A, V, itemsize):
    w_bytes = F * (A + V + 1) * itemsize
    if w_bytes <= _WEIGHT_BUDGET_BYTES or F <= 128:
        return F                                   # fully resident weights
    tF = _WEIGHT_BUDGET_BYTES // max((A + V + 1) * itemsize, 1)
    tF = max(128, (tF // 128) * 128)
    return min(tF, F)


def multimodal_fusion(audio_features, visual_features, weight, bias):
    """Pallas implementation of MultimodaFusion.forward.

    audio_features : (B, audio_dim, T)
    visual_features: (B, T, visual_dim)
    weight         : (fused_dim, audio_dim + visual_dim)   (PyTorch Linear layout)
    bias           : (fused_dim,)
    returns        : (B, fused_dim, T)
    """
    B, A, T = audio_features.shape
    Bv, Tv, V = visual_features.shape
    assert Bv == B and Tv == T
    F = weight.shape[0]
    assert weight.shape[1] == A + V

    # Weight split keeps the PyTorch (out, in) layout — no transposes needed.
    wa = weight[:, :A]                             # (F, A)
    wv = weight[:, A:]                             # (F, V)
    b2 = bias.reshape(F, 1)                        # (F, 1)

    in_item = jnp.dtype(audio_features.dtype).itemsize
    vis_item = jnp.dtype(visual_features.dtype).itemsize
    w_item = jnp.dtype(weight.dtype).itemsize
    out_item = in_item

    tT = _pick_time_tile(T, A, V, F, max(in_item, vis_item, out_item))
    tF = _pick_f_tile(F, A, V, w_item)

    n_t = pl.cdiv(T, tT)
    n_f = pl.cdiv(F, tF)
    # Keep at least 2 pipelined grid steps (both v7x TensorCores busy) when possible.
    while B * n_f * n_t < 2 and tT > 128:
        tT = max(128, ((tT // 2) // 128) * 128)
        n_t = pl.cdiv(T, tT)

    weights_resident = (n_f == 1)

    def _w_spec(shape, imap):
        if weights_resident:
            # Constant index map -> DMA'd once; single-buffer to halve resident VMEM.
            return pl.BlockSpec(shape, imap, pipeline_mode=pl.Buffered(1))
        return pl.BlockSpec(shape, imap)

    # Explicit VMEM budget: resident/streamed weights + double-buffered IO + headroom.
    w_nbuf = 1 if weights_resident else 2
    weight_bytes = w_nbuf * (
        _vmem_block_bytes((tF, A), w_item)
        + _vmem_block_bytes((tF, V), w_item)
        + _vmem_block_bytes((tF, 1), w_item)
    )
    stream_bytes = 2 * (
        _vmem_block_bytes((1, A, tT), in_item)
        + _vmem_block_bytes((1, tT, V), vis_item)
        + _vmem_block_bytes((1, tF, tT), out_item)
    )
    vmem_limit = weight_bytes + stream_bytes + 4 * 1024 * 1024
    vmem_limit = int(min(64 * 1024 * 1024, max(16 * 1024 * 1024, vmem_limit)))

    cost = pl.CostEstimate(
        flops=2 * B * T * (A + V) * F,
        transcendentals=0,
        bytes_accessed=(
            in_item * B * A * T
            + vis_item * B * T * V
            + out_item * B * F * T
            + w_item * (F * (A + V) + F)
        ),
    )

    out = pl.pallas_call(
        _fusion_kernel,
        out_shape=jax.ShapeDtypeStruct((B, F, T), audio_features.dtype),
        grid_spec=pl.GridSpec(
            grid=(B, n_f, n_t),
            in_specs=[
                pl.BlockSpec((1, A, tT), lambda b, f, t: (b, 0, t)),   # audio
                pl.BlockSpec((1, tT, V), lambda b, f, t: (b, t, 0)),   # visual
                _w_spec((tF, A), lambda b, f, t: (f, 0)),              # Wa
                _w_spec((tF, V), lambda b, f, t: (f, 0)),              # Wv
                _w_spec((tF, 1), lambda b, f, t: (f, 0)),              # bias
            ],
            out_specs=pl.BlockSpec((1, tF, tT), lambda b, f, t: (b, f, t)),
        ),
        compiler_params=pltpu.CompilerParams(
            dimension_semantics=("parallel", "parallel", "parallel"),
            vmem_limit_bytes=vmem_limit,
        ),
        cost_estimate=cost,
    )(audio_features, visual_features, wa, wv, b2)

    return out                                     # (B, F, T), no final transpose


def _reference(audio_features, visual_features, weight, bias):
    a = jnp.transpose(audio_features, (0, 2, 1))
    combined = jnp.concatenate([a, visual_features], axis=-1)
    fused = combined @ weight.T + bias
    return jnp.transpose(fused, (0, 2, 1))


def _run_case(key, B, A, V, F, T):
    k_a, k_v, k_w, k_b = jax.random.split(key, 4)
    audio = jax.random.normal(k_a, (B, A, T), dtype=jnp.float32)
    visual = jax.random.normal(k_v, (B, T, V), dtype=jnp.float32)
    fan_in = A + V
    bound = 1.0 / math.sqrt(fan_in)
    weight = jax.random.uniform(k_w, (F, fan_in), minval=-bound, maxval=bound,
                                dtype=jnp.float32)
    bias = jax.random.uniform(k_b, (F,), minval=-bound, maxval=bound,
                              dtype=jnp.float32)

    out = jax.block_until_ready(multimodal_fusion(audio, visual, weight, bias))
    ref = _reference(audio, visual, weight, bias)
    assert out.shape == (B, F, T)
    assert jnp.allclose(out, ref, atol=1e-5, rtol=1e-5)


if __name__ == "__main__":
    key = jax.random.PRNGKey(0)
    k1, k2 = jax.random.split(key, 2)

    # Small shapes consistent with the module's forward (T <= 128 -> full-dim tile).
    _run_case(k1, B=2, A=32, V=32, F=32, T=16)
    # Larger T with a ragged 128-multiple tail to exercise tiling + masked stores.
    _run_case(k2, B=2, A=40, V=24, F=48, T=200)

    print("KERNEL_OK")
</pallas_src>

<mosaic_0001>
module attributes {stable_mosaic.version = 11 : i64} {
  func.func @_fusion_kernel(%arg0: i32, %arg1: i32, %arg2: i32, %arg3: memref<1x32x16xf32, #tpu.memory_space<vmem>>, %arg4: memref<1x16x32xf32, #tpu.memory_space<vmem>>, %arg5: memref<32x32xf32, #tpu.memory_space<vmem>>, %arg6: memref<32x32xf32, #tpu.memory_space<vmem>>, %arg7: memref<32x1xf32, #tpu.memory_space<vmem>>, %arg8: memref<1x32x16xf32, #tpu.memory_space<vmem>>) attributes {dimension_semantics = [#tpu.dimension_semantics<parallel>, #tpu.dimension_semantics<parallel>, #tpu.dimension_semantics<parallel>], iteration_bounds = array<i64: 2, 1, 1>, scalar_prefetch = 0 : i64, scratch_operands = 0 : i64, tpu.core_type = #tpu.core_type<tc>, window_params = [{transform_indices = @transform_0, window_bounds = array<i64: 1, 32, 16>}, {transform_indices = @transform_1, window_bounds = array<i64: 1, 16, 32>}, {pipeline_mode = #tpu.pipeline_mode<synchronous>, transform_indices = @transform_2, window_bounds = array<i64: 32, 32>}, {pipeline_mode = #tpu.pipeline_mode<synchronous>, transform_indices = @transform_3, window_bounds = array<i64: 32, 32>}, {pipeline_mode = #tpu.pipeline_mode<synchronous>, transform_indices = @transform_4, window_bounds = array<i64: 32, 1>}, {transform_indices = @transform_5, window_bounds = array<i64: 1, 32, 16>}]} {
    %c0 = arith.constant 0 : index
    %c0_0 = arith.constant 0 : index
    %c0_1 = arith.constant 0 : index
    %0 = vector.load %arg3[%c0, %c0_0, %c0_1] : memref<1x32x16xf32, #tpu.memory_space<vmem>>, vector<1x32x16xf32>
    %1 = vector.shape_cast %0 : vector<1x32x16xf32> to vector<32x16xf32>
    %c0_2 = arith.constant 0 : index
    %c0_3 = arith.constant 0 : index
    %c0_4 = arith.constant 0 : index
    %2 = vector.load %arg4[%c0_2, %c0_3, %c0_4] : memref<1x16x32xf32, #tpu.memory_space<vmem>>, vector<1x16x32xf32>
    %3 = vector.shape_cast %2 : vector<1x16x32xf32> to vector<16x32xf32>
    %c0_5 = arith.constant 0 : index
    %c0_6 = arith.constant 0 : index
    %4 = vector.load %arg5[%c0_5, %c0_6] : memref<32x32xf32, #tpu.memory_space<vmem>>, vector<32x32xf32>
    %cst = arith.constant dense<0.000000e+00> : vector<32x16xf32>
    %5 = tpu.matmul %4, %1, %cst {dimension_numbers = #tpu.dot_dimension_numbers<[1], [0], [0], [1], [0, 0, 1, 1], [], []>} : vector<32x32xf32>, vector<32x16xf32>, vector<32x16xf32> -> vector<32x16xf32>
    %c0_7 = arith.constant 0 : index
    %c0_8 = arith.constant 0 : index
    %6 = vector.load %arg6[%c0_7, %c0_8] : memref<32x32xf32, #tpu.memory_space<vmem>>, vector<32x32xf32>
    %cst_9 = arith.constant dense<0.000000e+00> : vector<32x16xf32>
    %7 = tpu.matmul %6, %3, %cst_9 {dimension_numbers = #tpu.dot_dimension_numbers<[1], [1], [0], [0], [0, 0, 1, 0], [], []>} : vector<32x32xf32>, vector<16x32xf32>, vector<32x16xf32> -> vector<32x16xf32>
    %8 = arith.addf %5, %7 : vector<32x16xf32>
    %c0_10 = arith.constant 0 : index
    %c0_11 = arith.constant 0 : index
    %9 = vector.load %arg7[%c0_10, %c0_11] : memref<32x1xf32, #tpu.memory_space<vmem>>, vector<32x1xf32>
    %10 = vector.broadcast %9 : vector<32x1xf32> to vector<32x16xf32>
    %11 = arith.addf %8, %10 : vector<32x16xf32>
    %c0_12 = arith.constant 0 : index
    %c0_13 = arith.constant 0 : index
    %c0_14 = arith.constant 0 : index
    %12 = vector.load %arg8[%c0_12, %c0_13, %c0_14] : memref<1x32x16xf32, #tpu.memory_space<vmem>>, vector<1x32x16xf32>
    %13 = vector.shape_cast %12 : vector<1x32x16xf32> to vector<32x16xf32>
    %14 = vector.shape_cast %11 : vector<32x16xf32> to vector<1x32x16xf32>
    tpu.vector_store %arg8[%c0_12, %c0_13, %c0_14], %14 {strides = array<i32>} : memref<1x32x16xf32, #tpu.memory_space<vmem>>, vector<1x32x16xf32>,
    return
  }
  func.func @transform_0(%arg0: i32, %arg1: i32, %arg2: i32) -> (i32, i32, i32) {
    %c0_i32 = arith.constant 0 : i32
    %c0_i32_0 = arith.constant 0 : i32
    return %arg0, %c0_i32, %arg2 : i32, i32, i32
  }
  func.func @transform_1(%arg0: i32, %arg1: i32, %arg2: i32) -> (i32, i32, i32) {
    %c0_i32 = arith.constant 0 : i32
    %c0_i32_0 = arith.constant 0 : i32
    return %arg0, %arg2, %c0_i32 : i32, i32, i32
  }
  func.func @transform_2(%arg0: i32, %arg1: i32, %arg2: i32) -> (i32, i32) {
    %c0_i32 = arith.constant 0 : i32
    %c0_i32_0 = arith.constant 0 : i32
    return %arg1, %c0_i32 : i32, i32
  }
  func.func @transform_3(%arg0: i32, %arg1: i32, %arg2: i32) -> (i32, i32) {
    %c0_i32 = arith.constant 0 : i32
    %c0_i32_0 = arith.constant 0 : i32
    return %arg1, %c0_i32 : i32, i32
  }
  func.func @transform_4(%arg0: i32, %arg1: i32, %arg2: i32) -> (i32, i32) {
    %c0_i32 = arith.constant 0 : i32
    %c0_i32_0 = arith.constant 0 : i32
    return %arg1, %c0_i32 : i32, i32
  }
  func.func @transform_5(%arg0: i32, %arg1: i32, %arg2: i32) -> (i32, i32, i32) {
    %c0_i32 = arith.constant 0 : i32
    return %arg0, %arg1, %arg2 : i32, i32, i32
  }
}

</mosaic_0001>

<llo_original>
// kernel: tpu_custom_call.1
$region0: #{tpu_custom_call.1}
  #allocation0 [shape = 'u32[]', space=smem, size = 0x4, offset = 0x4, fixed_abs, tag = 'smem constant byte address 0x4 - core index']
  #allocation1 [shape = 'u32[144,128]{1,0:T(1,128)}', space=vmem, size = 0x12000, scoped, tag = 'internal scratch']
  %s0 = inlined_call_operand.vmem [shape: f32[2,32,16], index: 0, kind: input, shape index: {}]
  %s1 = inlined_call_operand.vmem [shape: f32[2,16,32], index: 1, kind: input, shape index: {}]
  %s2 = inlined_call_operand.vmem [shape: f32[32,32], index: 2, kind: input, shape index: {}]
  %s3 = inlined_call_operand.vmem [shape: f32[32,32], index: 3, kind: input, shape index: {}]
  %s4 = inlined_call_operand.vmem [shape: f32[32,1], index: 4, kind: input, shape index: {}]
  %s5 = inlined_call_operand.vmem [shape: f32[2,32,16], index: 5, kind: output, shape index: {}]
  %s6 = sld [smem:[#allocation0]]
  $region53: #{tpu_custom_call.1} parent=0
    _
  %s8 = ssub.s32 1, %s6
  %s9 = scalar_select 0, %s8, %s6
  loop: start=0, step=1, limit=4
  $region2: #{tpu_custom_call.1} parent=0 // loop_pre_header
    _
  $region3: #{tpu_custom_call.1} parent=0 // loop_header
    %s11 = sphi 0, %s15
    %p12 = scmp.ge.s32.totalorder %s11, 4
    %s18 = sphi 0, %s37
    %s19 = sphi 0, %s33
    %s20 = sphi 0, %s29
    %s21 = sphi 0, %s18
    %s22 = sphi 0, %s19
    %s23 = sphi 0, %s20
    %s24 = sphi 0, %s21
    %s25 = sphi 0, %s22
    %s26 = sphi 0, %s23
    %s42 = sphi 0, %s44
    %s45 = sphi 0, %s42
    %s46 = sphi 0, %s45
    %s62 = sphi 0, %s46
    %s70 = sphi 0, %s72
    %s73 = sphi 0, %s70
    %s74 = sphi 0, %s73
    %s90 = sphi 0, %s74
    %s96 = sphi 0, %s98
    %s99 = sphi 0, %s96
    %s100 = sphi 0, %s99
    %s116 = sphi 0, %s100
    %s122 = sphi 0, %s124
    %s125 = sphi 0, %s122
    %s126 = sphi 0, %s125
    %s142 = sphi 0, %s126
    %s148 = sphi 0, %s150
    %s151 = sphi 0, %s148
    %s152 = sphi 0, %s151
    %s168 = sphi 0, %s152
    %s178 = sphi 0, %s180
    %s181 = sphi 0, %s178
    %s182 = sphi 0, %s181
    %s198 = sphi 0, %s182
  $region4: #{tpu_custom_call.1} parent=0 // loop_header_branch
    %14 = sbr.rel (%p12) target = $region8
  $region5: #{tpu_custom_call.1} parent=0 // loop_body
    %s16 = ssub.s32 %s11, 1
    %s17 = ssub.s32 %s11, 2
    %s27 = sadd.s32 1, %s20
    %p28 = scmp.ge.s32.totalorder %s27, 1
    %s29 = scalar_select %p28, 0, %s27
    %s30 = sadd.s32 1, %s19
    %s31 = scalar_select %p28, %s30, %s19
    %p32 = scmp.ge.s32.totalorder %s31, 1
    %s33 = scalar_select %p32, 0, %s31
    %s34 = sadd.s32 1, %s18
    %s35 = scalar_select %p32, %s34, %s18
    %p36 = scmp.ge.s32.totalorder %s35, 2
    %s37 = scalar_select %p36, 0, %s35
    %s38 = ssub.s32 %s18, %s37
    %s39 = ssub.s32 %s20, %s29
    %s40 = sor.u32 %s38, %s39
    %p41 = scmp.eq.s32.totalorder %s40, 0
    %s43 = sadd.s32 %s42, 1
    %s44 = scalar_select %p41, %s42, %s43
    %p47 = pneg %p41
    %p48 = scmp.eq.s32.totalorder %s11, 1
    %p49 = por %p47, %p48
    %p50 = scmp.ne.s32.totalorder %s42, %s45
    %p51 = scmp.eq.s32.totalorder %s11, 0
    %p52 = por %p50, %p51
    %p53 = scmp.ne.s32.totalorder %s42, %s45
    %p54 = scmp.eq.s32.totalorder %s16, 1
    %p55 = por %p53, %p54
    %p56 = scmp.ne.s32.totalorder %s45, %s46
    %p57 = scmp.eq.s32.totalorder %s16, 0
    %p58 = por %p56, %p57
    %p59 = scmp.ne.s32.totalorder %s45, %s46
    %p60 = scmp.eq.s32.totalorder %s17, 1
    %p61 = por %p59, %p60
    %p63 = scmp.ne.s32.totalorder %s46, %s62
    %p64 = scmp.eq.s32.totalorder %s17, 0
    %p65 = por %p63, %p64
    %s66 = ssub.s32 %s18, %s37
    %s67 = ssub.s32 %s20, %s29
    %s68 = sor.u32 %s66, %s67
    %p69 = scmp.eq.s32.totalorder %s68, 0
    %s71 = sadd.s32 %s70, 1
    %s72 = scalar_select %p69, %s70, %s71
    %p75 = pneg %p69
    %p76 = scmp.eq.s32.totalorder %s11, 1
    %p77 = por %p75, %p76
    %p78 = scmp.ne.s32.totalorder %s70, %s73
    %p79 = scmp.eq.s32.totalorder %s11, 0
    %p80 = por %p78, %p79
    %p81 = scmp.ne.s32.totalorder %s70, %s73
    %p82 = scmp.eq.s32.totalorder %s16, 1
    %p83 = por %p81, %p82
    %p84 = scmp.ne.s32.totalorder %s73, %s74
    %p85 = scmp.eq.s32.totalorder %s16, 0
    %p86 = por %p84, %p85
    %p87 = scmp.ne.s32.totalorder %s73, %s74
    %p88 = scmp.eq.s32.totalorder %s17, 1
    %p89 = por %p87, %p88
    %p91 = scmp.ne.s32.totalorder %s74, %s90
    %p92 = scmp.eq.s32.totalorder %s17, 0
    %p93 = por %p91, %p92
    %s94 = ssub.s32 %s19, %s33
    %p95 = scmp.eq.s32.totalorder %s94, 0
    %s97 = sadd.s32 %s96, 1
    %s98 = scalar_select %p95, %s96, %s97
    %p101 = pneg %p95
    %p102 = scmp.eq.s32.totalorder %s11, 1
    %p103 = por %p101, %p102
    %p104 = scmp.ne.s32.totalorder %s96, %s99
    %p105 = scmp.eq.s32.totalorder %s11, 0
    %p106 = por %p104, %p105
    %p107 = scmp.ne.s32.totalorder %s96, %s99
    %p108 = scmp.eq.s32.totalorder %s16, 1
    %p109 = por %p107, %p108
    %p110 = scmp.ne.s32.totalorder %s99, %s100
    %p111 = scmp.eq.s32.totalorder %s16, 0
    %p112 = por %p110, %p111
    %p113 = scmp.ne.s32.totalorder %s99, %s100
    %p114 = scmp.eq.s32.totalorder %s17, 1
    %p115 = por %p113, %p114
    %p117 = scmp.ne.s32.totalorder %s100, %s116
    %p118 = scmp.eq.s32.totalorder %s17, 0
    %p119 = por %p117, %p118
    %s120 = ssub.s32 %s19, %s33
    %p121 = scmp.eq.s32.totalorder %s120, 0
    %s123 = sadd.s32 %s122, 1
    %s124 = scalar_select %p121, %s122, %s123
    %p127 = pneg %p121
    %p128 = scmp.eq.s32.totalorder %s11, 1
    %p129 = por %p127, %p128
    %p130 = scmp.ne.s32.totalorder %s122, %s125
    %p131 = scmp.eq.s32.totalorder %s11, 0
    %p132 = por %p130, %p131
    %p133 = scmp.ne.s32.totalorder %s122, %s125
    %p134 = scmp.eq.s32.totalorder %s16, 1
    %p135 = por %p133, %p134
    %p136 = scmp.ne.s32.totalorder %s125, %s126
    %p137 = scmp.eq.s32.totalorder %s16, 0
    %p138 = por %p136, %p137
    %p139 = scmp.ne.s32.totalorder %s125, %s126
    %p140 = scmp.eq.s32.totalorder %s17, 1
    %p141 = por %p139, %p140
    %p143 = scmp.ne.s32.totalorder %s126, %s142
    %p144 = scmp.eq.s32.totalorder %s17, 0
    %p145 = por %p143, %p144
    %s146 = ssub.s32 %s19, %s33
    %p147 = scmp.eq.s32.totalorder %s146, 0
    %s149 = sadd.s32 %s148, 1
    %s150 = scalar_select %p147, %s148, %s149
    %p153 = pneg %p147
    %p154 = scmp.eq.s32.totalorder %s11, 1
    %p155 = por %p153, %p154
    %p156 = scmp.ne.s32.totalorder %s148, %s151
    %p157 = scmp.eq.s32.totalorder %s11, 0
    %p158 = por %p156, %p157
    %p159 = scmp.ne.s32.totalorder %s148, %s151
    %p160 = scmp.eq.s32.totalorder %s16, 1
    %p161 = por %p159, %p160
    %p162 = scmp.ne.s32.totalorder %s151, %s152
    %p163 = scmp.eq.s32.totalorder %s16, 0
    %p164 = por %p162, %p163
    %p165 = scmp.ne.s32.totalorder %s151, %s152
    %p166 = scmp.eq.s32.totalorder %s17, 1
    %p167 = por %p165, %p166
    %p169 = scmp.ne.s32.totalorder %s152, %s168
    %p170 = scmp.eq.s32.totalorder %s17, 0
    %p171 = por %p169, %p170
    %s172 = ssub.s32 %s18, %s37
    %s173 = ssub.s32 %s19, %s33
    %s174 = sor.u32 %s172, %s173
    %s175 = ssub.s32 %s20, %s29
    %s176 = sor.u32 %s174, %s175
    %p177 = scmp.eq.s32.totalorder %s176, 0
    %s179 = sadd.s32 %s178, 1
    %s180 = scalar_select %p177, %s178, %s179
    %p183 = pneg %p177
    %p184 = scmp.eq.s32.totalorder %s11, 1
    %p185 = por %p183, %p184
    %p186 = scmp.ne.s32.totalorder %s178, %s181
    %p187 = scmp.eq.s32.totalorder %s11, 0
    %p188 = por %p186, %p187
    %p189 = scmp.ne.s32.totalorder %s178, %s181
    %p190 = scmp.eq.s32.totalorder %s16, 1
    %p191 = por %p189, %p190
    %p192 = scmp.ne.s32.totalorder %s181, %s182
    %p193 = scmp.eq.s32.totalorder %s16, 0
    %p194 = por %p192, %p193
    %p195 = scmp.ne.s32.totalorder %s181, %s182
    %p196 = scmp.eq.s32.totalorder %s17, 1
    %p197 = por %p195, %p196
    %p199 = scmp.ne.s32.totalorder %s182, %s198
    %p200 = scmp.eq.s32.totalorder %s17, 0
    %p201 = por %p199, %p200
    %p202 = scmp.le.s32.totalorder 1, %s11
    %p203 = scmp.lt.s32.totalorder %s11, 3
    %p204 = pnand %p202, %p203
    %p205 = pneg %p204
    // Predicated region
    $region9: #{tpu_custom_call.1} parent=5 // pred_check
      _
    $region10: #{tpu_custom_call.1} parent=5 // pred_check_branch
      %207 = sbr.rel (%p204) target = $region12
    $region11: #{tpu_custom_call.1} parent=5 // pred_region
      %s208 = ssub.s32 %s11, 1
      // Predicated region
      $region13: #{tpu_custom_call.1} parent=11 // pred_check
        %p209 = pneg %p112
      $region14: #{tpu_custom_call.1} parent=11 // pred_check_branch
        %211 = sbr.rel (%p209) target = $region16
      $region15: #{tpu_custom_call.1} parent=11 // pred_region
        %s212 = smul.u32 4, %s22
        %p213 = scmp.lt.s32.totalorder %s212, 3
        %s214 = scalar_select %p213, %s212, 3
        %s215 = smul.addr %s214, 8
        %s216 = scalar_lea.vmem %s2, %s215
        %s217 = smul.u32 4, %s22
      $region16: #{tpu_custom_call.1} parent=11 // pred_fallthru
        _
      // Predicated region
      $region17: #{tpu_custom_call.1} parent=11 // pred_check
        %p218 = pneg %p138
      $region18: #{tpu_custom_call.1} parent=11 // pred_check_branch
        %220 = sbr.rel (%p218) target = $region20
      $region19: #{tpu_custom_call.1} parent=11 // pred_region
        %s221 = smul.u32 4, %s22
        %p222 = scmp.lt.s32.totalorder %s221, 3
        %s223 = scalar_select %p222, %s221, 3
        %s224 = smul.addr %s223, 8
        %s225 = scalar_lea.vmem %s3, %s224
        %s226 = smul.u32 4, %s22
      $region20: #{tpu_custom_call.1} parent=11 // pred_fallthru
        _
      // Predicated region
      $region21: #{tpu_custom_call.1} parent=11 // pred_check
        %p227 = pneg %p164
      $region22: #{tpu_custom_call.1} parent=11 // pred_check_branch
        %229 = sbr.rel (%p227) target = $region24
      $region23: #{tpu_custom_call.1} parent=11 // pred_region
        %s230 = smul.u32 4, %s22
        %p231 = scmp.lt.s32.totalorder %s230, 3
        %s232 = scalar_select %p231, %s230, 3
        %s233 = smul.addr %s232, 8
        %s234 = scalar_lea.vmem %s4, %s233
        %s235 = smul.u32 4, %s22
      $region24: #{tpu_custom_call.1} parent=11 // pred_fallthru
        _
    $region12: #{tpu_custom_call.1} parent=5 // pred_fallthru
      _
    %p236 = scmp.lt.s32.totalorder %s11, 2
    // Predicated region
    $region25: #{tpu_custom_call.1} parent=5 // pred_check
      %p237 = pneg %p236
    $region26: #{tpu_custom_call.1} parent=5 // pred_check_branch
      %239 = sbr.rel (%p237) target = $region28
    $region27: #{tpu_custom_call.1} parent=5 // pred_region
      // Predicated region
      $region29: #{tpu_custom_call.1} parent=27 // pred_check
        %p240 = pneg %p52
      $region30: #{tpu_custom_call.1} parent=27 // pred_check_branch
        %242 = sbr.rel (%p240) target = $region32
      $region31: #{tpu_custom_call.1} parent=27 // pred_region
        %p243 = scmp.lt.s32.totalorder %s18, 1
        %s244 = scalar_select %p243, %s18, 1
        %p245 = scmp.lt.s32.totalorder %s20, 0
        %s246 = scalar_select %p245, %s20, 0
        %s247 = smul.addr %s244, 4
        %s248 = sadd.s32 %s246, %s247
        %s249 = smul.addr %s248, 8
        %s250 = scalar_lea.vmem %s0, %s249
      $region32: #{tpu_custom_call.1} parent=27 // pred_fallthru
        _
      // Predicated region
      $region33: #{tpu_custom_call.1} parent=27 // pred_check
        %p251 = pneg %p80
      $region34: #{tpu_custom_call.1} parent=27 // pred_check_branch
        %253 = sbr.rel (%p251) target = $region36
      $region35: #{tpu_custom_call.1} parent=27 // pred_region
        %s254 = smul.u32 2, %s20
        %p255 = scmp.lt.s32.totalorder %s18, 1
        %s256 = scalar_select %p255, %s18, 1
        %p257 = scmp.lt.s32.totalorder %s254, 1
        %s258 = scalar_select %p257, %s254, 1
        %s259 = smul.addr %s256, 2
        %s260 = sadd.s32 %s258, %s259
        %s261 = smul.addr %s260, 8
        %s262 = scalar_lea.vmem %s1, %s261
        %s263 = smul.u32 2, %s20
      $region36: #{tpu_custom_call.1} parent=27 // pred_fallthru
        _
    $region28: #{tpu_custom_call.1} parent=5 // pred_fallthru
      _
    %p264 = scmp.le.s32.totalorder 1, %s11
    %p265 = scmp.lt.s32.totalorder %s11, 3
    %p266 = pnand %p264, %p265
    %p267 = pneg %p266
    // Predicated region
    $region37: #{tpu_custom_call.1} parent=5 // pred_check
      _
    $region38: #{tpu_custom_call.1} parent=5 // pred_check_branch
      %269 = sbr.rel (%p266) target = $region40
    $region39: #{tpu_custom_call.1} parent=5 // pred_region
      %s270 = ssub.s32 %s11, 1
      %p271 = scmp.lt.s32.totalorder %s21, 1
      %s272 = scalar_select %p271, %s21, 1
      %p273 = scmp.lt.s32.totalorder %s23, 0
      %s274 = scalar_select %p273, %s23, 0
      %s275 = smul.addr %s272, 4
      %s276 = sadd.s32 %s274, %s275
      %s277 = smul.addr %s276, 8
      %s278 = scalar_lea.vmem %s0, %s277
      %p279 = pneg %p58
      %p280 = pneg %p55
      %s281 = smul.u32 2, %s23
      %p282 = scmp.lt.s32.totalorder %s21, 1
      %s283 = scalar_select %p282, %s21, 1
      %p284 = scmp.lt.s32.totalorder %s281, 1
      %s285 = scalar_select %p284, %s281, 1
      %s286 = smul.addr %s283, 2
      %s287 = sadd.s32 %s285, %s286
      %s288 = smul.addr %s287, 8
      %s289 = scalar_lea.vmem %s1, %s288
      %p290 = pneg %p86
      %p291 = pneg %p83
      %s292 = smul.u32 4, %s22
      %p293 = scmp.lt.s32.totalorder %s292, 3
      %s294 = scalar_select %p293, %s292, 3
      %s295 = smul.addr %s294, 8
      %s296 = scalar_lea.vmem %s2, %s295
      %p297 = pneg %p112
      %p298 = pneg %p109
      %s299 = smul.u32 4, %s22
      %p300 = scmp.lt.s32.totalorder %s299, 3
      %s301 = scalar_select %p300, %s299, 3
      %s302 = smul.addr %s301, 8
      %s303 = scalar_lea.vmem %s3, %s302
      %p304 = pneg %p138
      %p305 = pneg %p135
      %s306 = smul.u32 4, %s22
      %p307 = scmp.lt.s32.totalorder %s306, 3
      %s308 = scalar_select %p307, %s306, 3
      %s309 = smul.addr %s308, 8
      %s310 = scalar_lea.vmem %s4, %s309
      %p311 = pneg %p164
      %p312 = pneg %p161
      %p313 = pneg %p194
      %p314 = pneg %p191
      %s315 = smul.u32 4, %s22
      %p316 = scmp.lt.s32.totalorder %s21, 1
      %s317 = scalar_select %p316, %s21, 1
      %p318 = scmp.lt.s32.totalorder %s315, 3
      %s319 = scalar_select %p318, %s315, 3
      %p320 = scmp.lt.s32.totalorder %s23, 0
      %s321 = scalar_select %p320, %s23, 0
      %s322 = sadd.s32 %s321, %s319
      %s323 = smul.addr %s317, 4
      %s324 = sadd.s32 %s322, %s323
      %s325 = smul.addr %s324, 8
      %s326 = scalar_lea.vmem %s5, %s325
      %p327 = scmp.lt.s32.totalorder %s21, 1
      %s328 = scalar_select %p327, %s21, 1
      %p329 = scmp.lt.s32.totalorder %s23, 0
      %s330 = scalar_select %p329, %s23, 0
      %s331 = smul.addr %s328, 4
      %s332 = sadd.s32 %s330, %s331
      %s333 = smul.addr %s332, 8
      %s334 = scalar_lea.vmem %s0, %s333
      %s335 = smul.u32 2, %s23
      %p336 = scmp.lt.s32.totalorder %s21, 1
      %s337 = scalar_select %p336, %s21, 1
      %p338 = scmp.lt.s32.totalorder %s335, 1
      %s339 = scalar_select %p338, %s335, 1
      %s340 = smul.addr %s337, 2
      %s341 = sadd.s32 %s339, %s340
      %s342 = smul.addr %s341, 8
      %s343 = scalar_lea.vmem %s1, %s342
      %s344 = smul.u32 2, %s23
      %s345 = smul.u32 4, %s22
      %p346 = scmp.lt.s32.totalorder %s345, 3
      %s347 = scalar_select %p346, %s345, 3
      %s348 = smul.addr %s347, 8
      %s349 = scalar_lea.vmem %s2, %s348
      %s350 = smul.u32 4, %s22
      %s351 = smul.u32 4, %s22
      %p352 = scmp.lt.s32.totalorder %s351, 3
      %s353 = scalar_select %p352, %s351, 3
      %s354 = smul.addr %s353, 8
      %s355 = scalar_lea.vmem %s3, %s354
      %s356 = smul.u32 4, %s22
      %s357 = smul.u32 4, %s22
      %p358 = scmp.lt.s32.totalorder %s357, 3
      %s359 = scalar_select %p358, %s357, 3
      %s360 = smul.addr %s359, 8
      %s361 = scalar_lea.vmem %s4, %s360
      %s362 = smul.u32 4, %s22
      %s363 = smul.u32 4, %s22
      %p364 = scmp.lt.s32.totalorder %s21, 1
      %s365 = scalar_select %p364, %s21, 1
      %p366 = scmp.lt.s32.totalorder %s363, 3
      %s367 = scalar_select %p366, %s363, 3
      %p368 = scmp.lt.s32.totalorder %s23, 0
      %s369 = scalar_select %p368, %s23, 0
      %s370 = sadd.s32 %s369, %s367
      %s371 = smul.addr %s365, 4
      %s372 = sadd.s32 %s370, %s371
      %s373 = smul.addr %s372, 8
      %s374 = scalar_lea.vmem %s5, %s373
      %s375 = smul.u32 4, %s22
      %v376 = vld [vmem:[%s334] sm:$0xff]
      %v377 = vld [vmem:[%s334 + $0x8] sm:$0xff]
      %v378 = vld [vmem:[%s334 + $0x10] sm:$0xff]
      %v379 = vld [vmem:[%s334 + $0x18] sm:$0xff]
      %v380 = vld [vmem:[%s343] sm:$0xff]
      %v381 = vld [vmem:[%s343 + $0x8] sm:$0xff]
      %v382 = vld [vmem:[%s349] sm:$0xff]
      %v383 = vld [vmem:[%s349 + $0x8] sm:$0xff]
      %v384 = vld [vmem:[%s349 + $0x10] sm:$0xff]
      %v385 = vld [vmem:[%s349 + $0x18] sm:$0xff]
      %v386 = vld [vmem:[%s355] sm:$0xff]
      %v387 = vld [vmem:[%s355 + $0x8] sm:$0xff]
      %v388 = vld [vmem:[%s355 + $0x10] sm:$0xff]
      %v389 = vld [vmem:[%s355 + $0x18] sm:$0xff]
      %vm390 = vcmask 261120
      %v392 = vsel %vm390, %v386, 0
      %v395 = vsel %vm390, %v387, 0
      %v398 = vsel %vm390, %v388, 0
      %v401 = vsel %vm390, %v389, 0
      %v404 = vsel %vm390, %v380, 0
      %v407 = vsel %vm390, %v381, 0
      %409 = vmatprep.subr.mxu0 0.0
      %410 = vmatpush1.xpose.msra.mxu0 %v404
      %411 = vmatprep.subr.mxu0 0.0
      %412 = vmatpush1.xpose.msra.mxu0 %v407
      %413 = vmatprep.subr.mxu0 0.0
      %414 = vmatpush1.xpose.msra.mxu0 0.0
      %415 = vmatprep.subr.mxu0 0.0
      %416 = vmatpush1.xpose.msra.mxu0 0.0
      %417 = vmatprep.subr.mxu0 0.0
      %418 = vmatpush1.xpose.msra.mxu0 0.0
      %419 = vmatprep.subr.mxu0 0.0
      %420 = vmatpush1.xpose.msra.mxu0 0.0
      %421 = vmatprep.subr.mxu0 0.0
      %422 = vmatpush1.xpose.msra.mxu0 0.0
      %423 = vmatprep.subr.mxu0 0.0
      %424 = vmatpush1.xpose.msra.mxu0 0.0
      %425 = vmatprep.subr.mxu0 0.0
      %426 = vmatpush1.xpose.msra.mxu0 0.0
      %427 = vmatprep.subr.mxu0 0.0
      %428 = vmatpush1.xpose.msra.mxu0 0.0
      %429 = vmatprep.subr.mxu0 0.0
      %430 = vmatpush1.xpose.msra.mxu0 0.0
      %431 = vmatprep.subr.mxu0 0.0
      %432 = vmatpush1.xpose.msra.mxu0 0.0
      %433 = vmatprep.subr.mxu0 0.0
      %434 = vmatpush1.xpose.msra.mxu0 0.0
      %435 = vmatprep.subr.mxu0 0.0
      %436 = vmatpush1.xpose.msra.mxu0 0.0
      %437 = vmatprep.subr.mxu0 0.0
      %438 = vmatpush1.xpose.msra.mxu0 0.0
      %439 = vmatprep.subr.mxu0 0.0
      %440 = vmatpush1.xpose.msra.mxu0 0.0
      %441 = vmatprep.subr.mxu0 0.0
      %442 = vmatpush1.xpose.msra.mxu0 0.0
      %443 = vmatprep.subr.mxu0 0.0
      %444 = vmatpush1.xpose.msra.mxu0 0.0
      %445 = vmatprep.subr.mxu0 0.0
      %446 = vmatpush1.xpose.msra.mxu0 0.0
      %447 = vmatprep.subr.mxu0 0.0
      %448 = vmatpush1.xpose.msra.mxu0 0.0
      %449 = vmatprep.subr.mxu0 0.0
      %450 = vmatpush1.xpose.msra.mxu0 0.0
      %451 = vmatprep.subr.mxu0 0.0
      %452 = vmatpush1.xpose.msra.mxu0 0.0
      %453 = vmatprep.subr.mxu0 0.0
      %454 = vmatpush1.xpose.msra.mxu0 0.0
      %455 = vmatprep.subr.mxu0 0.0
      %456 = vmatpush1.xpose.msra.mxu0 0.0
      %457 = vmatprep.subr.mxu0 0.0
      %458 = vmatpush1.xpose.msra.mxu0 0.0
      %459 = vmatprep.subr.mxu0 0.0
      %460 = vmatpush1.xpose.msra.mxu0 0.0
      %461 = vmatprep.subr.mxu0 0.0
      %462 = vmatpush1.xpose.msra.mxu0 0.0
      %463 = vmatprep.subr.mxu0 0.0
      %464 = vmatpush1.xpose.msra.mxu0 0.0
      %465 = vmatprep.subr.mxu0 0.0
      %466 = vmatpush1.xpose.msra.mxu0 0.0
      %467 = vmatprep.subr.mxu0 0.0
      %468 = vmatpush1.xpose.msra.mxu0 0.0
      %469 = vmatprep.subr.mxu0 0.0
      %470 = vmatpush1.xpose.msra.mxu0 0.0
      %471 = vmatprep.subr.mxu0 0.0
      %472 = vmatpush1.xpose.msra.mxu0 0.0
      %473 = vmatprep.mubr.f32.mxu0 0.0
      %474 = vmatmul.mubr.f32.gmra.mrb[0].mxu0 %v392
      %v475 = vpop.f32.mrb[0].mxu0
      %v476 = vadd.f32 0.0, %v475
      %v477 = vpop.f32.mrb[0].mxu0
      %478 = vmatprep.mubr.f32.mxu0 0.0
      %479 = vmatmul.mubr.f32.gmra.mrb[0].mxu0 %v395
      %v480 = vpop.f32.mrb[0].mxu0
      %v481 = vadd.f32 0.0, %v480
      %v482 = vpop.f32.mrb[0].mxu0
      %483 = vmatprep.mubr.f32.mxu0 0.0
      %484 = vmatmul.mubr.f32.gmra.mrb[0].mxu0 %v398
      %v485 = vpop.f32.mrb[0].mxu0
      %v486 = vadd.f32 0.0, %v485
      %v487 = vpop.f32.mrb[0].mxu0
      %488 = vmatprep.mubr.f32.mxu0 0.0
      %489 = vmatmul.mubr.f32.gmra.mrb[0].mxu0 %v401
      %v490 = vpop.f32.mrb[0].mxu0
      %v491 = vadd.f32 0.0, %v490
      %v492 = vpop.f32.mrb[0].mxu0
      %493 = vdwg.mxu0
      %v495 = vsel %vm390, %v382, 0
      %v498 = vsel %vm390, %v383, 0
      %v501 = vsel %vm390, %v384, 0
      %v504 = vsel %vm390, %v385, 0
      %506 = vmatprep.subr.mxu0 0.0
      %507 = vmatpush1.msra.mxu0 %v376
      %508 = vmatprep.subr.mxu0 0.0
      %509 = vmatpush1.msra.mxu0 %v377
      %510 = vmatprep.subr.mxu0 0.0
      %511 = vmatpush1.msra.mxu0 %v378
      %512 = vmatprep.subr.mxu0 0.0
      %513 = vmatpush1.msra.mxu0 %v379
      %514 = vmatprep.subr.mxu0 0.0
      %515 = vmatpush1.msra.mxu0 0.0
      %516 = vmatprep.subr.mxu0 0.0
      %517 = vmatpush1.msra.mxu0 0.0
      %518 = vmatprep.subr.mxu0 0.0
      %519 = vmatpush1.msra.mxu0 0.0
      %520 = vmatprep.subr.mxu0 0.0
      %521 = vmatpush1.msra.mxu0 0.0
      %522 = vmatprep.subr.mxu0 0.0
      %523 = vmatpush1.msra.mxu0 0.0
      %524 = vmatprep.subr.mxu0 0.0
      %525 = vmatpush1.msra.mxu0 0.0
      %526 = vmatprep.subr.mxu0 0.0
      %527 = vmatpush1.msra.mxu0 0.0
      %528 = vmatprep.subr.mxu0 0.0
      %529 = vmatpush1.msra.mxu0 0.0
      %530 = vmatprep.subr.mxu0 0.0
      %531 = vmatpush1.msra.mxu0 0.0
      %532 = vmatprep.subr.mxu0 0.0
      %533 = vmatpush1.msra.mxu0 0.0
      %534 = vmatprep.subr.mxu0 0.0
      %535 = vmatpush1.msra.mxu0 0.0
      %536 = vmatprep.subr.mxu0 0.0
      %537 = vmatpush1.msra.mxu0 0.0
      %538 = vmatprep.subr.mxu0 0.0
      %539 = vmatpush1.msra.mxu0 0.0
      %540 = vmatprep.subr.mxu0 0.0
      %541 = vmatpush1.msra.mxu0 0.0
      %542 = vmatprep.subr.mxu0 0.0
      %543 = vmatpush1.msra.mxu0 0.0
      %544 = vmatprep.subr.mxu0 0.0
      %545 = vmatpush1.msra.mxu0 0.0
      %546 = vmatprep.subr.mxu0 0.0
      %547 = vmatpush1.msra.mxu0 0.0
      %548 = vmatprep.subr.mxu0 0.0
      %549 = vmatpush1.msra.mxu0 0.0
      %550 = vmatprep.subr.mxu0 0.0
      %551 = vmatpush1.msra.mxu0 0.0
      %552 = vmatprep.subr.mxu0 0.0
      %553 = vmatpush1.msra.mxu0 0.0
      %554 = vmatprep.subr.mxu0 0.0
      %555 = vmatpush1.msra.mxu0 0.0
      %556 = vmatprep.subr.mxu0 0.0
      %557 = vmatpush1.msra.mxu0 0.0
      %558 = vmatprep.subr.mxu0 0.0
      %559 = vmatpush1.msra.mxu0 0.0
      %560 = vmatprep.subr.mxu0 0.0
      %561 = vmatpush1.msra.mxu0 0.0
      %562 = vmatprep.subr.mxu0 0.0
      %563 = vmatpush1.msra.mxu0 0.0
      %564 = vmatprep.subr.mxu0 0.0
      %565 = vmatpush1.msra.mxu0 0.0
      %566 = vmatprep.subr.mxu0 0.0
      %567 = vmatpush1.msra.mxu0 0.0
      %568 = vmatprep.subr.mxu0 0.0
      %569 = vmatpush1.msra.mxu0 0.0
      %570 = vmatprep.mubr.f32.mxu0 0.0
      %571 = vmatmul.mubr.f32.gmra.mrb[0].mxu0 %v495
      %v572 = vpop.f32.mrb[0].mxu0
      %v573 = vadd.f32 %v476, %v572
      %v574 = vpop.f32.mrb[0].mxu0
      %575 = vmatprep.mubr.f32.mxu0 0.0
      %576 = vmatmul.mubr.f32.gmra.mrb[0].mxu0 %v498
      %v577 = vpop.f32.mrb[0].mxu0
      %v578 = vadd.f32 %v481, %v577
      %v579 = vpop.f32.mrb[0].mxu0
      %580 = vmatprep.mubr.f32.mxu0 0.0
      %581 = vmatmul.mubr.f32.gmra.mrb[0].mxu0 %v501
      %v582 = vpop.f32.mrb[0].mxu0
      %v583 = vadd.f32 %v486, %v582
      %v584 = vpop.f32.mrb[0].mxu0
      %585 = vmatprep.mubr.f32.mxu0 0.0
      %586 = vmatmul.mubr.f32.gmra.mrb[0].mxu0 %v504
      %v587 = vpop.f32.mrb[0].mxu0
      %v588 = vadd.f32 %v491, %v587
      %v589 = vpop.f32.mrb[0].mxu0
      %590 = vdwg.mxu0
      %v591 = vld [vmem:[%s361] sm:$0xff]
      %v592 = vld [vmem:[%s361 + $0x8] sm:$0xff]
      %v593 = vld [vmem:[%s361 + $0x10] sm:$0xff]
      %v594 = vld [vmem:[%s361 + $0x18] sm:$0xff]
      %596 = vset.pattern.permute.xlu0 0
      %597 = vperm.xlu0 %596, %v591
      %v598 = vpop.permute.xlu0 %597
      %601 = vset.pattern.permute.xlu0 0
      %602 = vperm.xlu0 %601, %v592
      %v603 = vpop.permute.xlu0 %602
      %606 = vset.pattern.permute.xlu0 0
      %607 = vperm.xlu0 %606, %v593
      %v608 = vpop.permute.xlu0 %607
      %611 = vset.pattern.permute.xlu0 0
      %612 = vperm.xlu0 %611, %v594
      %v613 = vpop.permute.xlu0 %612
      %v615 = vadd.f32 %v573, %v598
      %v616 = vadd.f32 %v578, %v603
      %v617 = vadd.f32 %v583, %v608
      %v618 = vadd.f32 %v588, %v613
      %vm619 = vcmask 130048
      %620 = vst.msk [vmem:[%s374] sm:$0xff] %vm619, %v615
      %621 = vst.msk [vmem:[%s374 + $0x8] sm:$0xff] %vm619, %v616
      %622 = vst.msk [vmem:[%s374 + $0x10] sm:$0xff] %vm619, %v617
      %623 = vst.msk [vmem:[%s374 + $0x18] sm:$0xff] %vm619, %v618
      %s624 = smul.u32 4, %s22
      %p625 = scmp.lt.s32.totalorder %s21, 1
      %s626 = scalar_select %p625, %s21, 1
      %p627 = scmp.lt.s32.totalorder %s624, 3
      %s628 = scalar_select %p627, %s624, 3
      %p629 = scmp.lt.s32.totalorder %s23, 0
      %s630 = scalar_select %p629, %s23, 0
      %s631 = sadd.s32 %s630, %s628
      %s632 = smul.addr %s626, 4
      %s633 = sadd.s32 %s631, %s632
      %s634 = smul.addr %s633, 8
      %s635 = scalar_lea.vmem %s5, %s634
      // Predicated region
      $region41: #{tpu_custom_call.1} parent=39 // pred_check
        %p636 = pneg %p191
      $region42: #{tpu_custom_call.1} parent=39 // pred_check_branch
        %638 = sbr.rel (%p636) target = $region44
      $region43: #{tpu_custom_call.1} parent=39 // pred_region
        %s639 = smul.u32 4, %s22
      $region44: #{tpu_custom_call.1} parent=39 // pred_fallthru
        _
    $region40: #{tpu_custom_call.1} parent=5 // pred_fallthru
      _
    %p640 = scmp.le.s32.totalorder 2, %s11
    // Predicated region
    $region45: #{tpu_custom_call.1} parent=5 // pred_check
      %p641 = pneg %p640
    $region46: #{tpu_custom_call.1} parent=5 // pred_check_branch
      %643 = sbr.rel (%p641) target = $region48
    $region47: #{tpu_custom_call.1} parent=5 // pred_region
      %s644 = ssub.s32 %s11, 2
      // Predicated region
      $region49: #{tpu_custom_call.1} parent=47 // pred_check
        %p645 = pneg %p197
      $region50: #{tpu_custom_call.1} parent=47 // pred_check_branch
        %647 = sbr.rel (%p645) target = $region52
      $region51: #{tpu_custom_call.1} parent=47 // pred_region
        %s648 = smul.u32 4, %s25
        %p649 = scmp.lt.s32.totalorder %s24, 1
        %s650 = scalar_select %p649, %s24, 1
        %p651 = scmp.lt.s32.totalorder %s648, 3
        %s652 = scalar_select %p651, %s648, 3
        %p653 = scmp.lt.s32.totalorder %s26, 0
        %s654 = scalar_select %p653, %s26, 0
        %s655 = sadd.s32 %s654, %s652
        %s656 = smul.addr %s650, 4
        %s657 = sadd.s32 %s655, %s656
        %s658 = smul.addr %s657, 8
        %s659 = scalar_lea.vmem %s5, %s658
      $region52: #{tpu_custom_call.1} parent=47 // pred_fallthru
        _
    $region48: #{tpu_custom_call.1} parent=5 // pred_fallthru
      _
  $region6: #{tpu_custom_call.1} parent=0 // loop_footer
    %s15 = sadd.s32 1, %s11
  $region7: #{tpu_custom_call.1} parent=0 // loop_footer_branch
    %10 = sbr.rel target = $region3
  $region8: #{tpu_custom_call.1} parent=0 // loop_exit
    _

</llo_original>
